<compile_context>
chip_gen: v6e
topology: v6e:2x2x1
jax: 0.10.0
libtpu: 0.0.40
codegen_flags: <defaults>
</compile_context>

<pallas_src>
import jax
import jax.numpy as jnp
from jax.experimental import pallas as pl
from jax.experimental.pallas import tpu as pltpu

IN_DIM = 2
HIDDEN = 50
OUT_DIM = 2

LANE = 128              # lane width: batch is padded to a multiple of this
MAX_BATCH_TILE = 4096   # largest batch tile per grid step (fits easily in VMEM
                        # on v5e/v6e/v7x even double-buffered)


def odefunc_kernel(y_ref, w1_ref, b1_ref, w2_ref, b2_ref, o_ref):
    # y_ref : (IN_DIM, T)      -- batch on the lane axis (lane-dense)
    # w1_ref: (HIDDEN, IN_DIM) -- PyTorch (out, in) layout
    # b1_ref: (HIDDEN, 1)
    # w2_ref: (OUT_DIM, HIDDEN)
    # b2_ref: (OUT_DIM, 1)
    # o_ref : (OUT_DIM, T)     -- lane-dense output
    y = y_ref[...].astype(jnp.float32)
    w1 = w1_ref[...].astype(jnp.float32)

    # Layer 1: contraction dim is only 2 -> skip the MXU, do two VPU
    # broadcast multiply-adds: (HIDDEN,1)*(1,T) outer-product style FMAs.
    h = (w1[:, 0:1] * y[0:1, :]
         + w1[:, 1:2] * y[1:2, :]
         + b1_ref[...].astype(jnp.float32))
    h = jnp.maximum(h, 0.0)  # ReLU

    # Layer 2: (OUT_DIM, HIDDEN) @ (HIDDEN, T) -> N = T fills the MXU lanes
    # and the result pops lane-dense.
    out = jnp.dot(w2_ref[...].astype(jnp.float32), h,
                  preferred_element_type=jnp.float32)
    out = out + b2_ref[...].astype(jnp.float32)
    o_ref[...] = out.astype(o_ref.dtype)


def ode_func_forward(t, y, w1, b1, w2, b2):
    """Pallas implementation of ODEFunc.forward(t, y). `t` is unused (as in PyTorch).

    y : (B, IN_DIM) row-major, like the PyTorch module.
    w1: (HIDDEN, IN_DIM), b1: (HIDDEN, 1), w2: (OUT_DIM, HIDDEN), b2: (OUT_DIM, 1)
        (weights in PyTorch's native (out, in) layout).
    Returns (B, OUT_DIM).
    """
    del t
    B = y.shape[0]

    # Pad batch to a lane multiple; pick the largest tile <= MAX_BATCH_TILE.
    b_pad = pl.cdiv(B, LANE) * LANE
    if b_pad <= MAX_BATCH_TILE:
        tile = b_pad
    else:
        tile = MAX_BATCH_TILE
        b_pad = pl.cdiv(b_pad, tile) * tile
    grid = (b_pad // tile,)

    # Transpose to feature-major (batch on lanes) and zero-pad the tail.
    # This is layout plumbing in the wrapper so the kernel's loads/stores and
    # the MXU N dimension are lane-dense.
    y_t = jnp.zeros((IN_DIM, b_pad), dtype=y.dtype).at[:, :B].set(y.T)

    out_t = pl.pallas_call(
        odefunc_kernel,
        out_shape=jax.ShapeDtypeStruct((OUT_DIM, b_pad), y.dtype),
        grid_spec=pltpu.PrefetchScalarGridSpec(
            num_scalar_prefetch=0,
            grid=grid,
            in_specs=[
                pl.BlockSpec((IN_DIM, tile), lambda i: (0, i)),    # y tile (lane-dense)
                pl.BlockSpec((HIDDEN, IN_DIM), lambda i: (0, 0)),  # w1 (hoisted)
                pl.BlockSpec((HIDDEN, 1), lambda i: (0, 0)),       # b1 (hoisted)
                pl.BlockSpec((OUT_DIM, HIDDEN), lambda i: (0, 0)), # w2 (hoisted)
                pl.BlockSpec((OUT_DIM, 1), lambda i: (0, 0)),      # b2 (hoisted)
            ],
            out_specs=pl.BlockSpec((OUT_DIM, tile), lambda i: (0, i)),
        ),
        compiler_params=pltpu.CompilerParams(
            dimension_semantics=("parallel",)
        ),
    )(y_t, w1, b1, w2, b2)

    # Back to (B, OUT_DIM), dropping the padded columns.
    return out_t[:, :B].T


def init_params(key):
    """Deterministic init matching nn.init.normal_(std=0.1) / constant_(0).

    Weights are kept in PyTorch's (out_features, in_features) layout.
    """
    k1, k2 = jax.random.split(key)
    w1 = (0.1 * jax.random.normal(k1, (HIDDEN, IN_DIM))).astype(jnp.float32)
    b1 = jnp.zeros((HIDDEN, 1), dtype=jnp.float32)
    w2 = (0.1 * jax.random.normal(k2, (OUT_DIM, HIDDEN))).astype(jnp.float32)
    b2 = jnp.zeros((OUT_DIM, 1), dtype=jnp.float32)
    return w1, b1, w2, b2


def _reference(y, w1, b1, w2, b2):
    # Pure-JAX reference of the PyTorch module (y @ W1.T + b1 -> ReLU -> @ W2.T + b2).
    h = jnp.maximum(y @ w1.T + b1.T, 0.0)
    return h @ w2.T + b2.T


if __name__ == "__main__":
    key = jax.random.PRNGKey(0)
    kparam, ky1, ky2 = jax.random.split(key, 3)

    w1, b1, w2, b2 = init_params(kparam)
    t = jnp.float32(0.0)  # ignored by the module

    ok = True

    # Small batch (padded up to one 128-lane tile inside the wrapper).
    y_a = jax.random.normal(ky1, (8, IN_DIM), dtype=jnp.float32)
    out_a = jax.block_until_ready(ode_func_forward(t, y_a, w1, b1, w2, b2))
    ref_a = _reference(y_a, w1, b1, w2, b2)
    ok &= out_a.shape == (8, OUT_DIM)
    ok &= bool(jnp.allclose(out_a, ref_a, atol=1e-5, rtol=1e-5))

    # Odd batch size (exercises the tail handling via padding).
    y_b = jax.random.normal(ky2, (5, IN_DIM), dtype=jnp.float32)
    out_b = jax.block_until_ready(ode_func_forward(t, y_b, w1, b1, w2, b2))
    ref_b = _reference(y_b, w1, b1, w2, b2)
    ok &= out_b.shape == (5, OUT_DIM)
    ok &= bool(jnp.allclose(out_b, ref_b, atol=1e-5, rtol=1e-5))

    assert ok
    print("KERNEL_OK")
</pallas_src>

<mosaic_0001>
module attributes {stable_mosaic.version = 11 : i64} {
  func.func @odefunc_kernel(%arg0: i32, %arg1: memref<2x128xf32, #tpu.memory_space<vmem>>, %arg2: memref<50x2xf32, #tpu.memory_space<vmem>>, %arg3: memref<50x1xf32, #tpu.memory_space<vmem>>, %arg4: memref<2x50xf32, #tpu.memory_space<vmem>>, %arg5: memref<2x1xf32, #tpu.memory_space<vmem>>, %arg6: memref<2x128xf32, #tpu.memory_space<vmem>>) attributes {dimension_semantics = [#tpu.dimension_semantics<parallel>], iteration_bounds = array<i64: 1>, scalar_prefetch = 0 : i64, scratch_operands = 0 : i64, tpu.core_type = #tpu.core_type<tc>, window_params = [{transform_indices = @transform_0, window_bounds = array<i64: 2, 128>}, {pipeline_mode = #tpu.pipeline_mode<synchronous>, transform_indices = @transform_1, window_bounds = array<i64: 50, 2>}, {pipeline_mode = #tpu.pipeline_mode<synchronous>, transform_indices = @transform_2, window_bounds = array<i64: 50, 1>}, {pipeline_mode = #tpu.pipeline_mode<synchronous>, transform_indices = @transform_3, window_bounds = array<i64: 2, 50>}, {pipeline_mode = #tpu.pipeline_mode<synchronous>, transform_indices = @transform_4, window_bounds = array<i64: 2, 1>}, {transform_indices = @transform_5, window_bounds = array<i64: 2, 128>}]} {
    %c0 = arith.constant 0 : index
    %c0_0 = arith.constant 0 : index
    %0 = vector.load %arg1[%c0, %c0_0] : memref<2x128xf32, #tpu.memory_space<vmem>>, vector<2x128xf32>
    %c0_1 = arith.constant 0 : index
    %c0_2 = arith.constant 0 : index
    %1 = vector.load %arg2[%c0_1, %c0_2] : memref<50x2xf32, #tpu.memory_space<vmem>>, vector<50x2xf32>
    %2 = vector.extract_strided_slice %1 {offsets = [0, 0], sizes = [50, 1], strides = [1, 1]} : vector<50x2xf32> to vector<50x1xf32>
    %3 = vector.extract_strided_slice %0 {offsets = [0, 0], sizes = [1, 128], strides = [1, 1]} : vector<2x128xf32> to vector<1x128xf32>
    %4 = vector.broadcast %2 : vector<50x1xf32> to vector<50x128xf32>
    %5 = vector.broadcast %3 : vector<1x128xf32> to vector<50x128xf32>
    %6 = arith.mulf %4, %5 : vector<50x128xf32>
    %7 = vector.extract_strided_slice %1 {offsets = [0, 1], sizes = [50, 1], strides = [1, 1]} : vector<50x2xf32> to vector<50x1xf32>
    %8 = vector.extract_strided_slice %0 {offsets = [1, 0], sizes = [1, 128], strides = [1, 1]} : vector<2x128xf32> to vector<1x128xf32>
    %9 = vector.broadcast %7 : vector<50x1xf32> to vector<50x128xf32>
    %10 = vector.broadcast %8 : vector<1x128xf32> to vector<50x128xf32>
    %11 = arith.mulf %9, %10 : vector<50x128xf32>
    %12 = arith.addf %6, %11 : vector<50x128xf32>
    %c0_3 = arith.constant 0 : index
    %c0_4 = arith.constant 0 : index
    %13 = vector.load %arg3[%c0_3, %c0_4] : memref<50x1xf32, #tpu.memory_space<vmem>>, vector<50x1xf32>
    %14 = vector.broadcast %13 : vector<50x1xf32> to vector<50x128xf32>
    %15 = arith.addf %12, %14 : vector<50x128xf32>
    %cst = arith.constant 0.000000e+00 : f32
    %16 = vector.broadcast %cst : f32 to vector<50x128xf32>
    %17 = arith.maximumf %15, %16 : vector<50x128xf32>
    %c0_5 = arith.constant 0 : index
    %c0_6 = arith.constant 0 : index
    %18 = vector.load %arg4[%c0_5, %c0_6] : memref<2x50xf32, #tpu.memory_space<vmem>>, vector<2x50xf32>
    %cst_7 = arith.constant dense<0.000000e+00> : vector<2x128xf32>
    %19 = tpu.matmul %18, %17, %cst_7 {dimension_numbers = #tpu.dot_dimension_numbers<[1], [0], [0], [1], [0, 0, 1, 1], [], []>} : vector<2x50xf32>, vector<50x128xf32>, vector<2x128xf32> -> vector<2x128xf32>
    %c0_8 = arith.constant 0 : index
    %c0_9 = arith.constant 0 : index
    %20 = vector.load %arg5[%c0_8, %c0_9] : memref<2x1xf32, #tpu.memory_space<vmem>>, vector<2x1xf32>
    %21 = vector.broadcast %20 : vector<2x1xf32> to vector<2x128xf32>
    %22 = arith.addf %19, %21 : vector<2x128xf32>
    %c0_10 = arith.constant 0 : index
    %c0_11 = arith.constant 0 : index
    %23 = vector.load %arg6[%c0_10, %c0_11] : memref<2x128xf32, #tpu.memory_space<vmem>>, vector<2x128xf32>
    tpu.vector_store %arg6[%c0_10, %c0_11], %22 {strides = array<i32>} : memref<2x128xf32, #tpu.memory_space<vmem>>, vector<2x128xf32>,
    return
  }
  func.func @transform_0(%arg0: i32) -> (i32, i32) {
    %c0_i32 = arith.constant 0 : i32
    %c0_i32_0 = arith.constant 0 : i32
    return %c0_i32, %arg0 : i32, i32
  }
  func.func @transform_1(%arg0: i32) -> (i32, i32) {
    %c0_i32 = arith.constant 0 : i32
    %c0_i32_0 = arith.constant 0 : i32
    %c0_i32_1 = arith.constant 0 : i32
    return %c0_i32, %c0_i32_0 : i32, i32
  }
  func.func @transform_2(%arg0: i32) -> (i32, i32) {
    %c0_i32 = arith.constant 0 : i32
    %c0_i32_0 = arith.constant 0 : i32
    %c0_i32_1 = arith.constant 0 : i32
    return %c0_i32, %c0_i32_0 : i32, i32
  }
  func.func @transform_3(%arg0: i32) -> (i32, i32) {
    %c0_i32 = arith.constant 0 : i32
    %c0_i32_0 = arith.constant 0 : i32
    %c0_i32_1 = arith.constant 0 : i32
    return %c0_i32, %c0_i32_0 : i32, i32
  }
  func.func @transform_4(%arg0: i32) -> (i32, i32) {
    %c0_i32 = arith.constant 0 : i32
    %c0_i32_0 = arith.constant 0 : i32
    %c0_i32_1 = arith.constant 0 : i32
    return %c0_i32, %c0_i32_0 : i32, i32
  }
  func.func @transform_5(%arg0: i32) -> (i32, i32) {
    %c0_i32 = arith.constant 0 : i32
    %c0_i32_0 = arith.constant 0 : i32
    return %c0_i32, %arg0 : i32, i32
  }
}

</mosaic_0001>

<llo_original>
// kernel: tpu_custom_call.1
$region0: #{tpu_custom_call.1}
  #allocation0 [shape = 'u32[]', space=smem, size = 0x4, offset = 0x4, fixed_abs, tag = 'smem constant byte address 0x4 - core index']
  #allocation1 [shape = 'u32[144,128]{1,0:T(1,128)}', space=vmem, size = 0x12000, scoped, tag = 'internal scratch']
  %s0 = inlined_call_operand.vmem [shape: f32[2,128], index: 0, kind: input, shape index: {}]
  %s1 = inlined_call_operand.vmem [shape: f32[50,2], index: 1, kind: input, shape index: {}]
  %s2 = inlined_call_operand.vmem [shape: f32[50,1], index: 2, kind: input, shape index: {}]
  %s3 = inlined_call_operand.vmem [shape: f32[2,50], index: 3, kind: input, shape index: {}]
  %s4 = inlined_call_operand.vmem [shape: f32[2,1], index: 4, kind: input, shape index: {}]
  %s5 = inlined_call_operand.hbm [shape: f32[2,128], index: 5, kind: output, shape index: {}]
  %s6 = sld [smem:[#allocation0]]
  $region30: #{tpu_custom_call.1} parent=0
    _
  %s8 = ssub.s32 1, %s6
  %s9 = scalar_select 0, %s8, %s6
  $region1: #{tpu_custom_call.1} parent=0
    #allocation2 [shape = 'u8[1024]{0}', space=vmem, size = 0x400, scoped, tag = 'output window, operand 0, single buffered']
    #allocation3 [shape = 's32[1]{0}', space=sflag, size = 0x4, scoped, tag = 'scoped memory for tpu_custom_call.1']
    %10 = vsyncpa [#allocation3], 0
    // Predicated region
    $region2: #{tpu_custom_call.1} parent=1 // pred_check
      _
    $region3: #{tpu_custom_call.1} parent=1 // pred_check_branch
      %12 = sbr.rel (0) target = $region5
    $region4: #{tpu_custom_call.1} parent=1 // pred_region
      _
    $region5: #{tpu_custom_call.1} parent=1 // pred_fallthru
      _
    // Predicated region
    $region6: #{tpu_custom_call.1} parent=1 // pred_check
      _
    $region7: #{tpu_custom_call.1} parent=1 // pred_check_branch
      %14 = sbr.rel (0) target = $region9
    $region8: #{tpu_custom_call.1} parent=1 // pred_region
      _
    $region9: #{tpu_custom_call.1} parent=1 // pred_fallthru
      _
    // Predicated region
    $region10: #{tpu_custom_call.1} parent=1 // pred_check
      _
    $region11: #{tpu_custom_call.1} parent=1 // pred_check_branch
      %16 = sbr.rel (0) target = $region13
    $region12: #{tpu_custom_call.1} parent=1 // pred_region
      _
    $region13: #{tpu_custom_call.1} parent=1 // pred_fallthru
      _
    // Predicated region
    $region14: #{tpu_custom_call.1} parent=1 // pred_check
      _
    $region15: #{tpu_custom_call.1} parent=1 // pred_check_branch
      %18 = sbr.rel (0) target = $region17
    $region16: #{tpu_custom_call.1} parent=1 // pred_region
      _
    $region17: #{tpu_custom_call.1} parent=1 // pred_fallthru
      _
    // Predicated region
    $region18: #{tpu_custom_call.1} parent=1 // pred_check
      _
    $region19: #{tpu_custom_call.1} parent=1 // pred_check_branch
      %20 = sbr.rel (0) target = $region21
    $region20: #{tpu_custom_call.1} parent=1 // pred_region
      _
    $region21: #{tpu_custom_call.1} parent=1 // pred_fallthru
      _
    %v21 = vld [vmem:[%s0] sm:$0x3]
    %v22 = vld [vmem:[%s1] sm:$0xff]
    %v23 = vld [vmem:[%s1 + $0x8] sm:$0xff]
    %v24 = vld [vmem:[%s1 + $0x10] sm:$0xff]
    %v25 = vld [vmem:[%s1 + $0x18] sm:$0xff]
    %v26 = vld [vmem:[%s1 + $0x20] sm:$0xff]
    %v27 = vld [vmem:[%s1 + $0x28] sm:$0xff]
    %v28 = vld [vmem:[%s1 + $0x30] sm:$0x3]
    %30 = vset.pattern.permute.xlu0 0
    %31 = vperm.xlu0 %30, %v22
    %v32 = vpop.permute.xlu0 %31
    %35 = vset.pattern.permute.xlu0 0
    %36 = vperm.xlu0 %35, %v23
    %v37 = vpop.permute.xlu0 %36
    %40 = vset.pattern.permute.xlu0 0
    %41 = vperm.xlu0 %40, %v24
    %v42 = vpop.permute.xlu0 %41
    %45 = vset.pattern.permute.xlu0 0
    %46 = vperm.xlu0 %45, %v25
    %v47 = vpop.permute.xlu0 %46
    %50 = vset.pattern.permute.xlu0 0
    %51 = vperm.xlu0 %50, %v26
    %v52 = vpop.permute.xlu0 %51
    %55 = vset.pattern.permute.xlu0 0
    %56 = vperm.xlu0 %55, %v27
    %v57 = vpop.permute.xlu0 %56
    %60 = vset.pattern.permute.xlu0 0
    %61 = vperm.xlu0 %60, %v28
    %v62 = vpop.permute.xlu0 %61
    %v64 = vlaneseq
    %v65 = vshrl.u32 %v64, 7
    %v66 = vsub.s32 0, %v65
    %v67 = vrot.slane %v21, %v66
    %v68 = vmul.f32 %v32, %v67
    %v69 = vmul.f32 %v37, %v67
    %v70 = vmul.f32 %v42, %v67
    %v71 = vmul.f32 %v47, %v67
    %v72 = vmul.f32 %v52, %v67
    %v73 = vmul.f32 %v57, %v67
    %v74 = vmul.f32 %v62, %v67
    %75 = vset.pattern.permute.xlu0 1
    %76 = vperm.xlu0 %75, %v22
    %v77 = vpop.permute.xlu0 %76
    %79 = vset.pattern.permute.xlu0 1
    %80 = vperm.xlu0 %79, %v23
    %v81 = vpop.permute.xlu0 %80
    %83 = vset.pattern.permute.xlu0 1
    %84 = vperm.xlu0 %83, %v24
    %v85 = vpop.permute.xlu0 %84
    %87 = vset.pattern.permute.xlu0 1
    %88 = vperm.xlu0 %87, %v25
    %v89 = vpop.permute.xlu0 %88
    %91 = vset.pattern.permute.xlu0 1
    %92 = vperm.xlu0 %91, %v26
    %v93 = vpop.permute.xlu0 %92
    %95 = vset.pattern.permute.xlu0 1
    %96 = vperm.xlu0 %95, %v27
    %v97 = vpop.permute.xlu0 %96
    %99 = vset.pattern.permute.xlu0 1
    %100 = vperm.xlu0 %99, %v28
    %v101 = vpop.permute.xlu0 %100
    %v103 = vlaneseq
    %v104 = vshrl.u32 %v103, 7
    %v105 = vsub.s32 1, %v104
    %v106 = vrot.slane %v21, %v105
    %v107 = vmul.f32 %v77, %v106
    %v108 = vmul.f32 %v81, %v106
    %v109 = vmul.f32 %v85, %v106
    %v110 = vmul.f32 %v89, %v106
    %v111 = vmul.f32 %v93, %v106
    %v112 = vmul.f32 %v97, %v106
    %v113 = vmul.f32 %v101, %v106
    %v114 = vadd.f32 %v68, %v107
    %v115 = vadd.f32 %v69, %v108
    %v116 = vadd.f32 %v70, %v109
    %v117 = vadd.f32 %v71, %v110
    %v118 = vadd.f32 %v72, %v111
    %v119 = vadd.f32 %v73, %v112
    %v120 = vadd.f32 %v74, %v113
    %v121 = vld [vmem:[%s2] sm:$0xff]
    %v122 = vld [vmem:[%s2 + $0x8] sm:$0xff]
    %v123 = vld [vmem:[%s2 + $0x10] sm:$0xff]
    %v124 = vld [vmem:[%s2 + $0x18] sm:$0xff]
    %v125 = vld [vmem:[%s2 + $0x20] sm:$0xff]
    %v126 = vld [vmem:[%s2 + $0x28] sm:$0xff]
    %v127 = vld [vmem:[%s2 + $0x30] sm:$0x3]
    %129 = vset.pattern.permute.xlu0 0
    %130 = vperm.xlu0 %129, %v121
    %v131 = vpop.permute.xlu0 %130
    %134 = vset.pattern.permute.xlu0 0
    %135 = vperm.xlu0 %134, %v122
    %v136 = vpop.permute.xlu0 %135
    %139 = vset.pattern.permute.xlu0 0
    %140 = vperm.xlu0 %139, %v123
    %v141 = vpop.permute.xlu0 %140
    %144 = vset.pattern.permute.xlu0 0
    %145 = vperm.xlu0 %144, %v124
    %v146 = vpop.permute.xlu0 %145
    %149 = vset.pattern.permute.xlu0 0
    %150 = vperm.xlu0 %149, %v125
    %v151 = vpop.permute.xlu0 %150
    %154 = vset.pattern.permute.xlu0 0
    %155 = vperm.xlu0 %154, %v126
    %v156 = vpop.permute.xlu0 %155
    %159 = vset.pattern.permute.xlu0 0
    %160 = vperm.xlu0 %159, %v127
    %v161 = vpop.permute.xlu0 %160
    %v163 = vadd.f32 %v114, %v131
    %v164 = vadd.f32 %v115, %v136
    %v165 = vadd.f32 %v116, %v141
    %v166 = vadd.f32 %v117, %v146
    %v167 = vadd.f32 %v118, %v151
    %v168 = vadd.f32 %v119, %v156
    %v169 = vadd.f32 %v120, %v161
    %v170 = vmax.f32 %v163, 0.0
    %v171 = vmax.f32 %v164, 0.0
    %v172 = vmax.f32 %v165, 0.0
    %v173 = vmax.f32 %v166, 0.0
    %v174 = vmax.f32 %v167, 0.0
    %v175 = vmax.f32 %v168, 0.0
    %v176 = vmax.f32 %v169, 0.0
    %v177 = vld [vmem:[%s3] sm:$0x3]
    %v178 = vld [vmem:[%s4] sm:$0x3]
    %180 = vset.pattern.permute.xlu0 0
    %181 = vperm.xlu0 %180, %v178
    %v182 = vpop.permute.xlu0 %181
    %vm184 = vcmask 408576
    %v186 = vsel %vm184, %v177, 0
    %vm188 = vcmask 1041408
    %v190 = vsel %vm188, %v176, 0
    %192 = vmatprep.subr.mxu0 0.0
    %193 = vmatpush1.msra.mxu0 0.0
    %194 = vmatprep.subr.mxu0 0.0
    %195 = vmatpush1.msra.mxu0 0.0
    %196 = vmatprep.subr.mxu0 0.0
    %197 = vmatpush1.msra.mxu0 0.0
    %198 = vmatprep.subr.mxu0 0.0
    %199 = vmatpush1.msra.mxu0 0.0
    %200 = vmatprep.subr.mxu0 0.0
    %201 = vmatpush1.msra.mxu0 0.0
    %202 = vmatprep.subr.mxu0 0.0
    %203 = vmatpush1.msra.mxu0 0.0
    %204 = vmatprep.subr.mxu0 0.0
    %205 = vmatpush1.msra.mxu0 0.0
    %206 = vmatprep.subr.mxu0 0.0
    %207 = vmatpush1.msra.mxu0 0.0
    %208 = vmatprep.subr.mxu0 0.0
    %209 = vmatpush1.msra.mxu0 0.0
    %210 = vmatprep.subr.mxu0 0.0
    %211 = vmatpush1.msra.mxu0 %v190
    %212 = vmatprep.subr.mxu0 0.0
    %213 = vmatpush1.msra.mxu0 %v175
    %214 = vmatprep.subr.mxu0 0.0
    %215 = vmatpush1.msra.mxu0 %v174
    %216 = vmatprep.subr.mxu0 0.0
    %217 = vmatpush1.msra.mxu0 %v173
    %218 = vmatprep.subr.mxu0 0.0
    %219 = vmatpush1.msra.mxu0 %v172
    %220 = vmatprep.subr.mxu0 0.0
    %221 = vmatpush1.msra.mxu0 %v171
    %222 = vmatprep.subr.mxu0 0.0
    %223 = vmatpush1.msra.mxu0 %v170
    %224 = vmatprep.subr.mxu0 0.0
    %225 = vmatpush2.msra.mxu0 0.0
    %226 = vmatprep.subr.mxu0 0.0
    %227 = vmatpush2.msra.mxu0 0.0
    %228 = vmatprep.subr.mxu0 0.0
    %229 = vmatpush2.msra.mxu0 0.0
    %230 = vmatprep.subr.mxu0 0.0
    %231 = vmatpush2.msra.mxu0 0.0
    %232 = vmatprep.subr.mxu0 0.0
    %233 = vmatpush2.msra.mxu0 0.0
    %234 = vmatprep.subr.mxu0 0.0
    %235 = vmatpush2.msra.mxu0 0.0
    %236 = vmatprep.subr.mxu0 0.0
    %237 = vmatpush2.msra.mxu0 0.0
    %238 = vmatprep.subr.mxu0 0.0
    %239 = vmatpush2.msra.mxu0 0.0
    %240 = vmatprep.subr.mxu0 0.0
    %241 = vmatpush2.msra.mxu0 0.0
    %242 = vmatprep.subr.mxu0 0.0
    %243 = vmatpush2.msra.mxu0 0.0
    %244 = vmatprep.subr.mxu0 0.0
    %245 = vmatpush2.msra.mxu0 0.0
    %246 = vmatprep.subr.mxu0 0.0
    %247 = vmatpush2.msra.mxu0 0.0
    %248 = vmatprep.subr.mxu0 0.0
    %249 = vmatpush2.msra.mxu0 0.0
    %250 = vmatprep.subr.mxu0 0.0
    %251 = vmatpush2.msra.mxu0 0.0
    %252 = vmatprep.subr.mxu0 0.0
    %253 = vmatpush2.msra.mxu0 0.0
    %254 = vmatprep.subr.mxu0 0.0
    %255 = vmatpush2.msra.mxu0 0.0
    %256 = vmatprep.mubr.f32.mxu0 0.0
    %257 = vmatmul.mubr.f32.gmra.mxu0 %v186
    %v258 = vpop.f32.mrf.mxu0
    %v259 = vadd.f32 %v182, %v258
    %v260 = vpop.f32.mrf.mxu0
    %261 = vdwg.mxu0
    %262 = vst [vmem:[#allocation2] sm:$0x3] %v259
    // Predicated region
    $region22: #{tpu_custom_call.1} parent=1 // pred_check
      _
    $region23: #{tpu_custom_call.1} parent=1 // pred_check_branch
      %264 = sbr.rel (0) target = $region25
    $region24: #{tpu_custom_call.1} parent=1 // pred_region
      %s266 = ssub.s32 32, 32
      %267 = vsyncadd [#allocation3], %s266
      %s269 = sshll.u32 [#allocation2], 4
      %s270 = int_to_ptr.vmem [resolvable:$true] %s269
      %272 = dma.vmem_to_hbm [thread:$0]  %s270, 32, %s5, [#allocation3]
    $region25: #{tpu_custom_call.1} parent=1 // pred_fallthru
      _
    // Predicated region
    $region26: #{tpu_custom_call.1} parent=1 // pred_check
      _
    $region27: #{tpu_custom_call.1} parent=1 // pred_check_branch
      %274 = sbr.rel (0) target = $region29
    $region28: #{tpu_custom_call.1} parent=1 // pred_region
      %275 = dma.done [#allocation3], 32
    $region29: #{tpu_custom_call.1} parent=1 // pred_fallthru
      _
    %276 = vsyncpa [#allocation3], 1

</llo_original>
